<compile_context>
chip_gen: v5e
topology: v5e:2x2
jax: 0.10.0
libtpu: 0.0.40
codegen_flags: <defaults>
</compile_context>

<pallas_src>
import jax
import jax.numpy as jnp
from jax import lax
from jax.experimental import pallas as pl
from jax.experimental.pallas import tpu as pltpu


def _critic_kernel(obs_ref, act_ref, w1o_ref, w1a_ref, b1_ref,
                   w2_ref, b2_ref, w3r_ref, b3_ref, o_ref):
    # obs_ref: (TB, n_state)   act_ref: (TB, n_action)
    # w1o_ref: (n_state, H1)   w1a_ref: (n_action, H1)   b1_ref: (1, H1)
    # w2_ref:  (H1, H2)        b2_ref:  (1, H2)
    # w3r_ref: (8, H2)   (W3^T replicated into a sublane-aligned row block)
    # b3_ref:  (1, 1)
    # o_ref:   (1, 1, TB)  lane-dense transposed output block
    h1 = jnp.dot(obs_ref[...], w1o_ref[...], preferred_element_type=jnp.float32)
    h1 = h1 + jnp.dot(act_ref[...], w1a_ref[...], preferred_element_type=jnp.float32)
    h1 = jnp.maximum(h1 + b1_ref[...], 0.0)                        # (TB, H1)

    h2 = jnp.dot(h1, w2_ref[...], preferred_element_type=jnp.float32) + b2_ref[...]
    h2 = jnp.maximum(h2, 0.0)                                      # (TB, H2)

    # Final layer computed transposed (flash-attention style NT contraction):
    #   (8, H2) . (TB, H2)^T -> (8, TB); row 0 is q^T, lane-dense over batch.
    q_rows = lax.dot_general(
        w3r_ref[...], h2,
        dimension_numbers=(((1,), (1,)), ((), ())),
        preferred_element_type=jnp.float32)
    q = q_rows[0:1, :] + b3_ref[...]                               # (1, TB)
    o_ref[0] = q.astype(o_ref.dtype)


def critic_forward(obs, action, params, *, tile_b=2048):
    """Pallas-backed Critic forward.

    obs:    (B, n_state)  float32
    action: (B, n_action) float32
    params: (w1, b1, w2, b2, w3, b3); weights stored (in_features, out_features)
    returns (B,) float32
    """
    w1, b1, w2, b2, w3, b3 = params
    B, n_state = obs.shape
    n_action = action.shape[-1]
    h1 = w1.shape[1]
    h2 = w2.shape[1]

    # Split first-layer weight so concat([obs, action]) never materializes.
    w1_obs = w1[:n_state]                                  # (n_state, h1)
    w1_act = w1[n_state:]                                  # (n_action, h1)
    # Final-layer weight as a sublane-aligned (8, h2) block (rows replicated);
    # only row 0 of the transposed matmul result is used.
    w3_rows = jnp.broadcast_to(jnp.reshape(w3, (1, h2)), (8, h2))

    # Fixed batch tile (multiple of 8); pad the batch up to whole tiles.
    tb = max(8, (int(tile_b) // 8) * 8)
    if B <= tb:
        tb = max(8, -(-B // 8) * 8)
    grid_b = -(-B // tb)                                   # ceil div
    b_pad = grid_b * tb
    if b_pad != B:
        obs = jnp.pad(obs, ((0, b_pad - B), (0, 0)))
        action = jnp.pad(action, ((0, b_pad - B), (0, 0)))

    out = pl.pallas_call(
        _critic_kernel,
        out_shape=jax.ShapeDtypeStruct((grid_b, 1, tb), jnp.float32),
        grid=(grid_b,),
        in_specs=[
            pl.BlockSpec((tb, n_state), lambda i: (i, 0)),     # obs tile
            pl.BlockSpec((tb, n_action), lambda i: (i, 0)),    # action tile
            pl.BlockSpec((n_state, h1), lambda i: (0, 0)),     # W1_obs (resident)
            pl.BlockSpec((n_action, h1), lambda i: (0, 0)),    # W1_act
            pl.BlockSpec((1, h1), lambda i: (0, 0)),           # b1
            pl.BlockSpec((h1, h2), lambda i: (0, 0)),          # W2
            pl.BlockSpec((1, h2), lambda i: (0, 0)),           # b2
            pl.BlockSpec((8, h2), lambda i: (0, 0)),           # W3 rows
            pl.BlockSpec((1, 1), lambda i: (0, 0)),            # b3
        ],
        out_specs=pl.BlockSpec((1, 1, tb), lambda i: (i, 0, 0)),
        compiler_params=pltpu.CompilerParams(
            dimension_semantics=("parallel",)),
    )(obs, action, w1_obs, w1_act, b1, w2, b2, w3_rows, b3)

    return out.reshape(b_pad)[:B]                          # squeeze(-1) -> (B,)


def init_critic_params(key, n_state, n_action, layers=(30, 30)):
    """Deterministic synthetic parameters; shapes mirror nn.Linear layers."""
    sizes = [n_state + n_action] + list(layers) + [1]
    params = []
    for li in range(len(sizes) - 1):
        fan_in, fan_out = sizes[li], sizes[li + 1]
        key, kw, kb = jax.random.split(key, 3)
        bound = 1.0 / jnp.sqrt(jnp.float32(fan_in))
        w = jax.random.uniform(kw, (fan_in, fan_out), jnp.float32, -bound, bound)
        b = jax.random.uniform(kb, (1, fan_out), jnp.float32, -bound, bound)
        params += [w, b]
    return tuple(params)


def critic_reference(obs, action, params):
    """Pure-JAX reference for correctness checking."""
    w1, b1, w2, b2, w3, b3 = params
    x = jnp.concatenate([obs, action], axis=-1)
    h = jnp.maximum(x @ w1 + b1, 0.0)
    h = jnp.maximum(h @ w2 + b2, 0.0)
    return (h @ w3 + b3)[:, 0]


if __name__ == "__main__":
    n_state, n_action = 12, 4
    batch = 8

    key = jax.random.PRNGKey(0)
    k_obs, k_act, k_par = jax.random.split(key, 3)
    obs = jax.random.normal(k_obs, (batch, n_state), jnp.float32)
    action = jax.random.normal(k_act, (batch, n_action), jnp.float32)
    params = init_critic_params(k_par, n_state, n_action, layers=(30, 30))

    q = jax.block_until_ready(critic_forward(obs, action, params))
    q_ref = critic_reference(obs, action, params)
    assert q.shape == (batch,), q.shape
    assert jnp.allclose(q, q_ref, atol=1e-4, rtol=1e-4), (q, q_ref)

    # Multi-tile + ragged-batch path (exercises pipelining and padding).
    batch2 = 1000
    k_obs2, k_act2 = jax.random.split(jax.random.PRNGKey(1), 2)
    obs2 = jax.random.normal(k_obs2, (batch2, n_state), jnp.float32)
    act2 = jax.random.normal(k_act2, (batch2, n_action), jnp.float32)
    q2 = jax.block_until_ready(critic_forward(obs2, act2, params, tile_b=256))
    q2_ref = critic_reference(obs2, act2, params)
    assert q2.shape == (batch2,), q2.shape
    assert jnp.allclose(q2, q2_ref, atol=1e-4, rtol=1e-4), "multi-tile mismatch"

    print("KERNEL_OK")
</pallas_src>

<mosaic_0001>
module attributes {stable_mosaic.version = 11 : i64} {
  func.func @_critic_kernel(%arg0: i32, %arg1: memref<8x12xf32, #tpu.memory_space<vmem>>, %arg2: memref<8x4xf32, #tpu.memory_space<vmem>>, %arg3: memref<12x30xf32, #tpu.memory_space<vmem>>, %arg4: memref<4x30xf32, #tpu.memory_space<vmem>>, %arg5: memref<1x30xf32, #tpu.memory_space<vmem>>, %arg6: memref<30x30xf32, #tpu.memory_space<vmem>>, %arg7: memref<1x30xf32, #tpu.memory_space<vmem>>, %arg8: memref<8x30xf32, #tpu.memory_space<vmem>>, %arg9: memref<1x1xf32, #tpu.memory_space<vmem>>, %arg10: memref<1x1x8xf32, #tpu.memory_space<vmem>>) attributes {dimension_semantics = [#tpu.dimension_semantics<parallel>], iteration_bounds = array<i64: 1>, scalar_prefetch = 0 : i64, scratch_operands = 0 : i64, tpu.core_type = #tpu.core_type<tc>, window_params = [{transform_indices = @transform_0, window_bounds = array<i64: 8, 12>}, {transform_indices = @transform_1, window_bounds = array<i64: 8, 4>}, {pipeline_mode = #tpu.pipeline_mode<synchronous>, transform_indices = @transform_2, window_bounds = array<i64: 12, 30>}, {pipeline_mode = #tpu.pipeline_mode<synchronous>, transform_indices = @transform_3, window_bounds = array<i64: 4, 30>}, {pipeline_mode = #tpu.pipeline_mode<synchronous>, transform_indices = @transform_4, window_bounds = array<i64: 1, 30>}, {pipeline_mode = #tpu.pipeline_mode<synchronous>, transform_indices = @transform_5, window_bounds = array<i64: 30, 30>}, {pipeline_mode = #tpu.pipeline_mode<synchronous>, transform_indices = @transform_6, window_bounds = array<i64: 1, 30>}, {pipeline_mode = #tpu.pipeline_mode<synchronous>, transform_indices = @transform_7, window_bounds = array<i64: 8, 30>}, {pipeline_mode = #tpu.pipeline_mode<synchronous>, transform_indices = @transform_8, window_bounds = array<i64: 1, 1>}, {transform_indices = @transform_9, window_bounds = array<i64: 1, 1, 8>}]} {
    %c0 = arith.constant 0 : index
    %c0_0 = arith.constant 0 : index
    %0 = vector.load %arg1[%c0, %c0_0] : memref<8x12xf32, #tpu.memory_space<vmem>>, vector<8x12xf32>
    %c0_1 = arith.constant 0 : index
    %c0_2 = arith.constant 0 : index
    %1 = vector.load %arg3[%c0_1, %c0_2] : memref<12x30xf32, #tpu.memory_space<vmem>>, vector<12x30xf32>
    %cst = arith.constant dense<0.000000e+00> : vector<8x30xf32>
    %2 = tpu.matmul %0, %1, %cst {dimension_numbers = #tpu.dot_dimension_numbers<[1], [0], [0], [1], [0, 0, 1, 1], [], []>} : vector<8x12xf32>, vector<12x30xf32>, vector<8x30xf32> -> vector<8x30xf32>
    %c0_3 = arith.constant 0 : index
    %c0_4 = arith.constant 0 : index
    %3 = vector.load %arg2[%c0_3, %c0_4] : memref<8x4xf32, #tpu.memory_space<vmem>>, vector<8x4xf32>
    %c0_5 = arith.constant 0 : index
    %c0_6 = arith.constant 0 : index
    %4 = vector.load %arg4[%c0_5, %c0_6] : memref<4x30xf32, #tpu.memory_space<vmem>>, vector<4x30xf32>
    %cst_7 = arith.constant dense<0.000000e+00> : vector<8x30xf32>
    %5 = tpu.matmul %3, %4, %cst_7 {dimension_numbers = #tpu.dot_dimension_numbers<[1], [0], [0], [1], [0, 0, 1, 1], [], []>} : vector<8x4xf32>, vector<4x30xf32>, vector<8x30xf32> -> vector<8x30xf32>
    %6 = arith.addf %2, %5 : vector<8x30xf32>
    %c0_8 = arith.constant 0 : index
    %c0_9 = arith.constant 0 : index
    %7 = vector.load %arg5[%c0_8, %c0_9] : memref<1x30xf32, #tpu.memory_space<vmem>>, vector<1x30xf32>
    %8 = vector.broadcast %7 : vector<1x30xf32> to vector<8x30xf32>
    %9 = arith.addf %6, %8 : vector<8x30xf32>
    %cst_10 = arith.constant 0.000000e+00 : f32
    %10 = vector.broadcast %cst_10 : f32 to vector<8x30xf32>
    %11 = arith.maximumf %9, %10 : vector<8x30xf32>
    %c0_11 = arith.constant 0 : index
    %c0_12 = arith.constant 0 : index
    %12 = vector.load %arg6[%c0_11, %c0_12] : memref<30x30xf32, #tpu.memory_space<vmem>>, vector<30x30xf32>
    %cst_13 = arith.constant dense<0.000000e+00> : vector<8x30xf32>
    %13 = tpu.matmul %11, %12, %cst_13 {dimension_numbers = #tpu.dot_dimension_numbers<[1], [0], [0], [1], [0, 0, 1, 1], [], []>} : vector<8x30xf32>, vector<30x30xf32>, vector<8x30xf32> -> vector<8x30xf32>
    %c0_14 = arith.constant 0 : index
    %c0_15 = arith.constant 0 : index
    %14 = vector.load %arg7[%c0_14, %c0_15] : memref<1x30xf32, #tpu.memory_space<vmem>>, vector<1x30xf32>
    %15 = vector.broadcast %14 : vector<1x30xf32> to vector<8x30xf32>
    %16 = arith.addf %13, %15 : vector<8x30xf32>
    %cst_16 = arith.constant 0.000000e+00 : f32
    %17 = vector.broadcast %cst_16 : f32 to vector<8x30xf32>
    %18 = arith.maximumf %16, %17 : vector<8x30xf32>
    %c0_17 = arith.constant 0 : index
    %c0_18 = arith.constant 0 : index
    %19 = vector.load %arg8[%c0_17, %c0_18] : memref<8x30xf32, #tpu.memory_space<vmem>>, vector<8x30xf32>
    %cst_19 = arith.constant dense<0.000000e+00> : vector<8x8xf32>
    %20 = tpu.matmul %19, %18, %cst_19 {dimension_numbers = #tpu.dot_dimension_numbers<[1], [1], [0], [0], [0, 0, 1, 0], [], []>} : vector<8x30xf32>, vector<8x30xf32>, vector<8x8xf32> -> vector<8x8xf32>
    %21 = vector.extract_strided_slice %20 {offsets = [0, 0], sizes = [1, 8], strides = [1, 1]} : vector<8x8xf32> to vector<1x8xf32>
    %c0_20 = arith.constant 0 : index
    %c0_21 = arith.constant 0 : index
    %22 = vector.load %arg9[%c0_20, %c0_21] : memref<1x1xf32, #tpu.memory_space<vmem>>, vector<1x1xf32>
    %23 = vector.broadcast %22 : vector<1x1xf32> to vector<1x8xf32>
    %24 = arith.addf %21, %23 : vector<1x8xf32>
    %c0_22 = arith.constant 0 : index
    %c0_23 = arith.constant 0 : index
    %c0_24 = arith.constant 0 : index
    %25 = vector.load %arg10[%c0_22, %c0_23, %c0_24] : memref<1x1x8xf32, #tpu.memory_space<vmem>>, vector<1x1x8xf32>
    %26 = vector.shape_cast %25 : vector<1x1x8xf32> to vector<1x8xf32>
    %27 = vector.shape_cast %24 : vector<1x8xf32> to vector<1x1x8xf32>
    tpu.vector_store %arg10[%c0_22, %c0_23, %c0_24], %27 {strides = array<i32>} : memref<1x1x8xf32, #tpu.memory_space<vmem>>, vector<1x1x8xf32>,
    return
  }
  func.func @transform_0(%arg0: i32) -> (i32, i32) {
    %c0_i32 = arith.constant 0 : i32
    %c0_i32_0 = arith.constant 0 : i32
    return %arg0, %c0_i32 : i32, i32
  }
  func.func @transform_1(%arg0: i32) -> (i32, i32) {
    %c0_i32 = arith.constant 0 : i32
    %c0_i32_0 = arith.constant 0 : i32
    return %arg0, %c0_i32 : i32, i32
  }
  func.func @transform_2(%arg0: i32) -> (i32, i32) {
    %c0_i32 = arith.constant 0 : i32
    %c0_i32_0 = arith.constant 0 : i32
    %c0_i32_1 = arith.constant 0 : i32
    return %c0_i32, %c0_i32_0 : i32, i32
  }
  func.func @transform_3(%arg0: i32) -> (i32, i32) {
    %c0_i32 = arith.constant 0 : i32
    %c0_i32_0 = arith.constant 0 : i32
    %c0_i32_1 = arith.constant 0 : i32
    return %c0_i32, %c0_i32_0 : i32, i32
  }
  func.func @transform_4(%arg0: i32) -> (i32, i32) {
    %c0_i32 = arith.constant 0 : i32
    %c0_i32_0 = arith.constant 0 : i32
    %c0_i32_1 = arith.constant 0 : i32
    return %c0_i32, %c0_i32_0 : i32, i32
  }
  func.func @transform_5(%arg0: i32) -> (i32, i32) {
    %c0_i32 = arith.constant 0 : i32
    %c0_i32_0 = arith.constant 0 : i32
    %c0_i32_1 = arith.constant 0 : i32
    return %c0_i32, %c0_i32_0 : i32, i32
  }
  func.func @transform_6(%arg0: i32) -> (i32, i32) {
    %c0_i32 = arith.constant 0 : i32
    %c0_i32_0 = arith.constant 0 : i32
    %c0_i32_1 = arith.constant 0 : i32
    return %c0_i32, %c0_i32_0 : i32, i32
  }
  func.func @transform_7(%arg0: i32) -> (i32, i32) {
    %c0_i32 = arith.constant 0 : i32
    %c0_i32_0 = arith.constant 0 : i32
    %c0_i32_1 = arith.constant 0 : i32
    return %c0_i32, %c0_i32_0 : i32, i32
  }
  func.func @transform_8(%arg0: i32) -> (i32, i32) {
    %c0_i32 = arith.constant 0 : i32
    %c0_i32_0 = arith.constant 0 : i32
    %c0_i32_1 = arith.constant 0 : i32
    return %c0_i32, %c0_i32_0 : i32, i32
  }
  func.func @transform_9(%arg0: i32) -> (i32, i32, i32) {
    %c0_i32 = arith.constant 0 : i32
    %c0_i32_0 = arith.constant 0 : i32
    %c0_i32_1 = arith.constant 0 : i32
    return %arg0, %c0_i32, %c0_i32_0 : i32, i32, i32
  }
}

</mosaic_0001>

<llo_original>
// kernel: tpu_custom_call.1
$region0: #{tpu_custom_call.1}
  #allocation0 [shape = 'u32[]', space=smem, size = 0x4, offset = 0x4, fixed_abs, tag = 'smem constant byte address 0x4 - core index']
  #allocation1 [shape = 'u32[72,128]{1,0:T(1,128)}', space=vmem, size = 0x9000, scoped, tag = 'internal scratch']
  #allocation2 [shape = 'f32[1,1]{1,0:T(1,128)S(1)}', space=vmem, size = 0x200, scoped, tag = 'scoped memory for tpu_custom_call.1']
  %s0 = inlined_call_operand.vmem [shape: f32[8,12], index: 0, kind: input, shape index: {}]
  %s1 = inlined_call_operand.vmem [shape: f32[8,4], index: 1, kind: input, shape index: {}]
  %s2 = inlined_call_operand.hbm [shape: f32[12,30], index: 2, kind: input, shape index: {}]
  %s3 = inlined_call_operand.hbm [shape: f32[4,30], index: 3, kind: input, shape index: {}]
  %s4 = inlined_call_operand.vmem [shape: f32[1,30], index: 4, kind: input, shape index: {}]
  %s5 = inlined_call_operand.hbm [shape: f32[30,30], index: 5, kind: input, shape index: {}]
  %s6 = inlined_call_operand.vmem [shape: f32[1,30], index: 6, kind: input, shape index: {}]
  %s7 = inlined_call_operand.vmem [shape: f32[8,30], index: 7, kind: input, shape index: {}]
  %s8 = inlined_call_operand.<no memory space> [shape: f32[1,1], index: 8, kind: input, shape index: {}]
  %s9 = inlined_call_operand.hbm [shape: f32[1,1,8], index: 9, kind: output, shape index: {}]
  %s10 = sld [smem:[#allocation0]]
  $region58: #{tpu_custom_call.1} parent=0
    _
  %s12 = ssub.s32 1, %s10
  %s13 = scalar_select 0, %s12, %s10
  %v14 = vstv %s8
  %15 = vst [vmem:[#allocation2] sm:$0x1] %v14
  $region1: #{tpu_custom_call.1} parent=0
    #allocation3 [shape = 'u8[8192]{0}', space=vmem, size = 0x2000, scoped, tag = 'input window, operand 2, single buffered']
    #allocation4 [shape = 's32[1]{0}', space=sflag, size = 0x4, scoped, tag = 'scoped memory for tpu_custom_call.1']
    #allocation5 [shape = 's32[1]{0}', space=sflag, size = 0x4, scoped, tag = 'scoped memory for tpu_custom_call.1']
    #allocation6 [shape = 'u8[2048]{0}', space=vmem, size = 0x800, scoped, tag = 'input window, operand 3, single buffered']
    #allocation7 [shape = 's32[1]{0}', space=sflag, size = 0x4, scoped, tag = 'scoped memory for tpu_custom_call.1']
    #allocation8 [shape = 'u8[16384]{0}', space=vmem, size = 0x4000, scoped, tag = 'input window, operand 5, single buffered']
    #allocation9 [shape = 'u8[512]{0}', space=vmem, size = 0x400, scoped, tag = 'output window, operand 0, single buffered']
    %16 = vsyncpa [#allocation4], 0
    %17 = vsyncpa [#allocation7], 0
    %18 = vsyncpa [#allocation5], 0
    // Predicated region
    $region2: #{tpu_custom_call.1} parent=1 // pred_check
      _
    $region3: #{tpu_custom_call.1} parent=1 // pred_check_branch
      %20 = sbr.rel (0) target = $region5
    $region4: #{tpu_custom_call.1} parent=1 // pred_region
      _
    $region5: #{tpu_custom_call.1} parent=1 // pred_fallthru
      _
    // Predicated region
    $region6: #{tpu_custom_call.1} parent=1 // pred_check
      _
    $region7: #{tpu_custom_call.1} parent=1 // pred_check_branch
      %22 = sbr.rel (0) target = $region9
    $region8: #{tpu_custom_call.1} parent=1 // pred_region
      _
    $region9: #{tpu_custom_call.1} parent=1 // pred_fallthru
      _
    // Predicated region
    $region10: #{tpu_custom_call.1} parent=1 // pred_check
      _
    $region11: #{tpu_custom_call.1} parent=1 // pred_check_branch
      %24 = sbr.rel (0) target = $region13
    $region12: #{tpu_custom_call.1} parent=1 // pred_region
      %26 = vsyncadd [#allocation4], 0
      %s27 = sshll.u32 %s2, 4
      %s28 = int_to_ptr.hbm [resolvable:$true] %s27
      %s29 = sshll.u32 [#allocation3], 4
      %s30 = int_to_ptr.vmem [resolvable:$true] %s29
      %35 = dma.hbm_to_vmem [thread:$0]  %s28, 256, %s30, [#allocation4], 128, 128, 8
    $region13: #{tpu_custom_call.1} parent=1 // pred_fallthru
      _
    // Predicated region
    $region14: #{tpu_custom_call.1} parent=1 // pred_check
      _
    $region15: #{tpu_custom_call.1} parent=1 // pred_check_branch
      %37 = sbr.rel (0) target = $region17
    $region16: #{tpu_custom_call.1} parent=1 // pred_region
      %39 = vsyncadd [#allocation7], 0
      %s41 = sshll.u32 %s3, 4
      %s42 = int_to_ptr.hbm [resolvable:$true] %s41
      %s43 = sshll.u32 [#allocation6], 4
      %s44 = int_to_ptr.vmem [resolvable:$true] %s43
      %46 = dma.hbm_to_vmem [thread:$0]  %s42, 64, %s44, [#allocation7]
    $region17: #{tpu_custom_call.1} parent=1 // pred_fallthru
      _
    // Predicated region
    $region18: #{tpu_custom_call.1} parent=1 // pred_check
      _
    $region19: #{tpu_custom_call.1} parent=1 // pred_check_branch
      %48 = sbr.rel (0) target = $region21
    $region20: #{tpu_custom_call.1} parent=1 // pred_region
      _
    $region21: #{tpu_custom_call.1} parent=1 // pred_fallthru
      _
    // Predicated region
    $region22: #{tpu_custom_call.1} parent=1 // pred_check
      _
    $region23: #{tpu_custom_call.1} parent=1 // pred_check_branch
      %50 = sbr.rel (0) target = $region25
    $region24: #{tpu_custom_call.1} parent=1 // pred_region
      %52 = vsyncadd [#allocation7], 0
      %s53 = sshll.u32 %s5, 4
      %s54 = int_to_ptr.hbm [resolvable:$true] %s53
      %s55 = sshll.u32 [#allocation8], 4
      %s56 = int_to_ptr.vmem [resolvable:$true] %s55
      %61 = dma.hbm_to_vmem [thread:$0]  %s54, 512, %s56, [#allocation7], 128, 128, 8
    $region25: #{tpu_custom_call.1} parent=1 // pred_fallthru
      _
    // Predicated region
    $region26: #{tpu_custom_call.1} parent=1 // pred_check
      _
    $region27: #{tpu_custom_call.1} parent=1 // pred_check_branch
      %63 = sbr.rel (0) target = $region29
    $region28: #{tpu_custom_call.1} parent=1 // pred_region
      _
    $region29: #{tpu_custom_call.1} parent=1 // pred_fallthru
      _
    // Predicated region
    $region30: #{tpu_custom_call.1} parent=1 // pred_check
      _
    $region31: #{tpu_custom_call.1} parent=1 // pred_check_branch
      %65 = sbr.rel (0) target = $region33
    $region32: #{tpu_custom_call.1} parent=1 // pred_region
      _
    $region33: #{tpu_custom_call.1} parent=1 // pred_fallthru
      _
    // Predicated region
    $region34: #{tpu_custom_call.1} parent=1 // pred_check
      _
    $region35: #{tpu_custom_call.1} parent=1 // pred_check_branch
      %67 = sbr.rel (0) target = $region37
    $region36: #{tpu_custom_call.1} parent=1 // pred_region
      _
    $region37: #{tpu_custom_call.1} parent=1 // pred_fallthru
      _
    // Predicated region
    $region38: #{tpu_custom_call.1} parent=1 // pred_check
      _
    $region39: #{tpu_custom_call.1} parent=1 // pred_check_branch
      %69 = sbr.rel (0) target = $region41
    $region40: #{tpu_custom_call.1} parent=1 // pred_region
      %71 = dma.done [#allocation4], 256
    $region41: #{tpu_custom_call.1} parent=1 // pred_fallthru
      _
    // Predicated region
    $region42: #{tpu_custom_call.1} parent=1 // pred_check
      _
    $region43: #{tpu_custom_call.1} parent=1 // pred_check_branch
      %73 = sbr.rel (0) target = $region45
    $region44: #{tpu_custom_call.1} parent=1 // pred_region
      %75 = dma.done [#allocation7], 64
    $region45: #{tpu_custom_call.1} parent=1 // pred_fallthru
      _
    // Predicated region
    $region46: #{tpu_custom_call.1} parent=1 // pred_check
      _
    $region47: #{tpu_custom_call.1} parent=1 // pred_check_branch
      %77 = sbr.rel (0) target = $region49
    $region48: #{tpu_custom_call.1} parent=1 // pred_region
      %79 = dma.done [#allocation7], 512
    $region49: #{tpu_custom_call.1} parent=1 // pred_fallthru
      _
    %v80 = vld [vmem:[%s0] sm:$0xff]
    %v81 = vld [vmem:[#allocation3] sm:$0xff]
    %v82 = vld [vmem:[#allocation3 + $0x8] sm:$0xf]
    %v83 = vld [vmem:[%s1] sm:$0xff]
    %v84 = vld [vmem:[#allocation6] sm:$0xf]
    %vm85 = vcmask 31744
    %v87 = vsel %vm85, %v83, 0
    %vm89 = vcmask 1043456
    %v91 = vsel %vm89, %v84, 0
    %93 = vmatpush.msra.mxu0 0.0
    %94 = vmatpush.msra.mxu0 0.0
    %95 = vmatpush.msra.mxu0 0.0
    %96 = vmatpush.msra.mxu0 0.0
    %97 = vmatpush.msra.mxu0 0.0
    %98 = vmatpush.msra.mxu0 0.0
    %99 = vmatpush.msra.mxu0 0.0
    %100 = vmatpush.msra.mxu0 0.0
    %101 = vmatpush.msra.mxu0 0.0
    %102 = vmatpush.msra.mxu0 0.0
    %103 = vmatpush.msra.mxu0 0.0
    %104 = vmatpush.msra.mxu0 0.0
    %105 = vmatpush.msra.mxu0 0.0
    %106 = vmatpush.msra.mxu0 0.0
    %107 = vmatpush.msra.mxu0 0.0
    %108 = vmatpush.msra.mxu0 %v91
    %109 = vmatmul.f32.gmra.mxu0 %v87
    %v110 = vpop.f32.mrf.mxu0
    %v111 = vadd.f32 0.0, %v110
    %112 = vdwg.mxu0
    %vm113 = vcmask 97280
    %v115 = vsel %vm113, %v80, 0
    %v118 = vsel %vm89, %v82, 0
    %120 = vmatpush.msra.mxu0 0.0
    %121 = vmatpush.msra.mxu0 0.0
    %122 = vmatpush.msra.mxu0 0.0
    %123 = vmatpush.msra.mxu0 0.0
    %124 = vmatpush.msra.mxu0 0.0
    %125 = vmatpush.msra.mxu0 0.0
    %126 = vmatpush.msra.mxu0 0.0
    %127 = vmatpush.msra.mxu0 0.0
    %128 = vmatpush.msra.mxu0 0.0
    %129 = vmatpush.msra.mxu0 0.0
    %130 = vmatpush.msra.mxu0 0.0
    %131 = vmatpush.msra.mxu0 0.0
    %132 = vmatpush.msra.mxu0 0.0
    %133 = vmatpush.msra.mxu0 0.0
    %134 = vmatpush.msra.mxu0 %v118
    %135 = vmatpush.msra.mxu0 %v81
    %136 = vmatmul.f32.gmra.mxu0 %v115
    %v137 = vpop.f32.mrf.mxu0
    %v138 = vadd.f32 %v111, %v137
    %139 = vdwg.mxu0
    %v140 = vld [vmem:[%s4] sm:$0x1]
    %v142 = vperm.slane %v140, 0
    %v144 = vadd.f32 %v138, %v142
    %v145 = vmax.f32 %v144, 0.0
    %v146 = vld [vmem:[#allocation8] sm:$0xff]
    %v147 = vld [vmem:[#allocation8 + $0x8] sm:$0xff]
    %v148 = vld [vmem:[#allocation8 + $0x10] sm:$0xff]
    %v149 = vld [vmem:[#allocation8 + $0x18] sm:$0x3f]
    %v150 = vld [vmem:[%s6] sm:$0x1]
    %v152 = vperm.slane %v150, 0
    %vm154 = vcmask 244736
    %v156 = vsel %vm154, %v145, 0
    %vm158 = vcmask 1045504
    %v160 = vsel %vm158, %v149, 0
    %162 = vmatpush.msra.mxu0 0.0
    %163 = vmatpush.msra.mxu0 0.0
    %164 = vmatpush.msra.mxu0 0.0
    %165 = vmatpush.msra.mxu0 0.0
    %166 = vmatpush.msra.mxu0 0.0
    %167 = vmatpush.msra.mxu0 0.0
    %168 = vmatpush.msra.mxu0 0.0
    %169 = vmatpush.msra.mxu0 0.0
    %170 = vmatpush.msra.mxu0 0.0
    %171 = vmatpush.msra.mxu0 0.0
    %172 = vmatpush.msra.mxu0 0.0
    %173 = vmatpush.msra.mxu0 0.0
    %174 = vmatpush.msra.mxu0 %v160
    %175 = vmatpush.msra.mxu0 %v148
    %176 = vmatpush.msra.mxu0 %v147
    %177 = vmatpush.msra.mxu0 %v146
    %178 = vmatmul.f32.gmra.mxu0 %v156
    %v179 = vpop.f32.mrf.mxu0
    %v180 = vadd.f32 %v152, %v179
    %181 = vdwg.mxu0
    %v182 = vmax.f32 %v180, 0.0
    %v183 = vld [vmem:[%s7] sm:$0xff]
    %v185 = vsel %vm154, %v183, 0
    %v188 = vsel %vm154, %v182, 0
    %190 = vmatpush.xpose.msra.mxu0 0.0
    %191 = vmatpush.xpose.msra.mxu0 0.0
    %192 = vmatpush.xpose.msra.mxu0 0.0
    %193 = vmatpush.xpose.msra.mxu0 0.0
    %194 = vmatpush.xpose.msra.mxu0 0.0
    %195 = vmatpush.xpose.msra.mxu0 0.0
    %196 = vmatpush.xpose.msra.mxu0 0.0
    %197 = vmatpush.xpose.msra.mxu0 0.0
    %198 = vmatpush.xpose.msra.mxu0 0.0
    %199 = vmatpush.xpose.msra.mxu0 0.0
    %200 = vmatpush.xpose.msra.mxu0 0.0
    %201 = vmatpush.xpose.msra.mxu0 0.0
    %202 = vmatpush.xpose.msra.mxu0 0.0
    %203 = vmatpush.xpose.msra.mxu0 0.0
    %204 = vmatpush.xpose.msra.mxu0 0.0
    %205 = vmatpush.xpose.msra.mxu0 %v188
    %206 = vmatmul.f32.gmra.mxu0 %v185
    %v207 = vpop.f32.mrf.mxu0
    %v208 = vadd.f32 0.0, %v207
    %209 = vdwg.mxu0
    %v210 = vld [vmem:[#allocation2] sm:$0x1]
    %212 = vset.pattern.permute.xlu0 0
    %213 = vperm.xlu0 %212, %v210
    %v214 = vpop.permute.xlu0 %213
    %v216 = vperm.slane %v214, 0
    %v217 = vadd.f32 %v208, %v216
    %vm218 = vcmask 57344
    %219 = vst.msk [vmem:[#allocation9] sm:$0x1] %vm218, %v217
    // Predicated region
    $region50: #{tpu_custom_call.1} parent=1 // pred_check
      _
    $region51: #{tpu_custom_call.1} parent=1 // pred_check_branch
      %221 = sbr.rel (0) target = $region53
    $region52: #{tpu_custom_call.1} parent=1 // pred_region
      %223 = vsyncadd [#allocation5], 0
      %s225 = sshll.u32 [#allocation9], 4
      %s226 = int_to_ptr.vmem [resolvable:$true] %s225
      %s227 = sshll.u32 %s9, 4
      %s228 = int_to_ptr.hbm [resolvable:$true] %s227
      %230 = dma.vmem_to_hbm [thread:$0]  %s226, 16, %s228, [#allocation5]
    $region53: #{tpu_custom_call.1} parent=1 // pred_fallthru
      _
    // Predicated region
    $region54: #{tpu_custom_call.1} parent=1 // pred_check
      _
    $region55: #{tpu_custom_call.1} parent=1 // pred_check_branch
      %232 = sbr.rel (0) target = $region57
    $region56: #{tpu_custom_call.1} parent=1 // pred_region
      %234 = dma.done [#allocation5], 16
    $region57: #{tpu_custom_call.1} parent=1 // pred_fallthru
      _
    %235 = vsyncpa [#allocation4], 1
    %236 = vsyncpa [#allocation7], 1
    %237 = vsyncpa [#allocation5], 1

</llo_original>
